<compile_context>
chip_gen: v7x
topology: tpu7x:2x2x1
jax: 0.10.0
libtpu: 0.0.40
codegen_flags: <defaults>
</compile_context>

<pallas_src>
import math

import numpy as np
import jax
import jax.numpy as jnp
from jax.experimental import pallas as pl
from jax.experimental.pallas import tpu as pltpu


def _dft_matrices(n):
    """Ortho-scaled, symmetric DFT cos/sin matrices: cos/sqrt(n), sin/sqrt(n)."""
    k = np.arange(n)
    ang = 2.0 * np.pi * np.outer(k, k) / n
    s = 1.0 / np.sqrt(float(n))
    return (np.cos(ang) * s).astype(np.float32), (np.sin(ang) * s).astype(np.float32)


def _gaussian_weight(h, w, sigma=10.0, mu=0.0):
    # Exact replica of FocalFrequencyLoss.gaussian_filter + np.fft.ifftshift
    # + the torch .view(...) raw reinterpretation, followed by the compounded
    # G*(1-G) real-part scaling squared (see semantics note above).
    x, y = np.meshgrid(np.linspace(-1, 1, h), np.linspace(-1, 1, w))
    d = np.sqrt(x * x + y * y)
    g = np.exp(-((d - mu) ** 2 / (1.0 * sigma ** 2)))
    g = np.fft.ifftshift(g)
    g = np.reshape(g, (h, w))  # mimics torch .view() (row-major reinterpret)
    return ((g * (1.0 - g)) ** 2).astype(np.float32)


def _ffl_kernel(p_ref, t1_ref, t2_ref, cwsw_ref, chsh_ref, w2t_ref, out_ref):
    h = chsh_ref.shape[0]          # image height
    w = cwsw_ref.shape[0]          # image width
    tb = p_ref.shape[0] // h       # images in this grid block

    # DFT of the differences (linearity of the DFT), both diffs stacked on M.
    p = p_ref[...]
    xs = jnp.concatenate([p - t1_ref[...], p - t2_ref[...]], axis=0)    # (2*tb*h, w)

    # Column-side DFT for all images and both diffs: ONE matmul, N = 2w.
    # yc = [U | V] per image row-block, U = X @ Cw, V = X @ Sw.
    yc = jnp.dot(xs, cwsw_ref[...], preferred_element_type=jnp.float32)  # (2*tb*h, 2w)

    # Batched minor-dim transpose (XLU) -> (2tb, 2w, h); then ONE dense matmul
    # against [Ch | Sh] performs the row-side DFT for every image at once.
    yt = jnp.transpose(yc.reshape(2 * tb, h, 2 * w), (0, 2, 1))          # (2tb, 2w, h)
    yr = jnp.dot(yt.reshape(2 * tb * 2 * w, h), chsh_ref[...],
                 preferred_element_type=jnp.float32)                    # (4*tb*w, 2h)
    yr = yr.reshape(2 * tb, 2 * w, 2 * h)

    uc = yr[:, :w, :h]   # (U^T Ch) = (Ch U)^T
    us = yr[:, :w, h:]   # (U^T Sh) = (Sh U)^T
    vc = yr[:, w:, :h]   # (V^T Ch) = (Ch V)^T
    vs = yr[:, w:, h:]   # (V^T Sh) = (Sh V)^T

    re_t = uc - vs                       # Re(F)^T
    im_t = us + vc                       # -Im(F)^T (sign irrelevant: squared)

    d = w2t_ref[...][None, :, :] * (re_t * re_t) + im_t * im_t           # (2tb, w, h)
    d1 = d[:tb]                          # pred - target1
    d2 = d[tb:]                          # pred - target2

    low = jnp.sum(d1)
    high = jnp.sum(jnp.maximum(d1, d2))

    # Single lane-dense (8, 128) output tile per block: low in sublane row 0,
    # high in sublane row 1 (one unmasked vst, one DMA descriptor per step).
    row = jax.lax.broadcasted_iota(jnp.int32, (8, 128), 0)
    tile = jnp.where(row == 0, low, jnp.where(row == 1, high, 0.0))
    out_ref[...] = tile[None, :, :]


def _vmem_budget():
    """(tile-selection budget, hard vmem_limit cap) in bytes, per generation."""
    try:
        kind = jax.devices()[0].device_kind.lower()
    except Exception:  # pragma: no cover - defensive
        kind = ""
    if "v7" in kind:                       # 64 MiB physical per TensorCore
        return 40 * 2**20, 56 * 2**20
    if "v5" in kind or "v6" in kind:       # 128 MiB physical
        return 96 * 2**20, 110 * 2**20
    return 40 * 2**20, 56 * 2**20          # unknown: stay conservative


def _choose_tb(b, h, w, tile_budget):
    """Images per grid block + conservative VMEM bookkeeping."""
    q = 8 // math.gcd(h, 8)                       # tb granule so tb*h % 8 == 0
    per_img = h * w * 4 * 36                      # conservative live f32/pixel
    const_b = (2 * w * w + 2 * h * h + w * h + 8 * 128) * 4 * 2
    avail = max(tile_budget - const_b - (2 << 20), per_img)
    tb = min(b, max(1, avail // per_img), max(1, 1024 // h))
    if b >= 2:
        tb = min(tb, -(-b // 2))                  # >= 2 blocks: both TCs busy (v7x)
    tb = max(q, (tb // q) * q)                    # sublane legality granule
    return int(tb), int(const_b), int(per_img)


def focal_frequency_loss(target1, target2, pred):
    n, c, h, w = pred.shape
    assert c == 1, "reference module's gaussian view() only supports C == 1"
    b = n * c

    tile_budget, hard_cap = _vmem_budget()
    tb, const_b, per_img = _choose_tb(b, h, w, tile_budget)
    nblocks = -(-b // tb)                  # cdiv
    bpad = nblocks * tb

    def prep(x):
        x2d = x.reshape(b * h, w).astype(jnp.float32)
        if bpad != b:
            # zero-padded images -> zero differences -> zero loss contribution
            x2d = jnp.pad(x2d, ((0, (bpad - b) * h), (0, 0)))
        return x2d

    p2 = prep(pred)
    a2 = prep(target1)
    b2 = prep(target2)

    ch, sh = _dft_matrices(h)
    cw, sw = _dft_matrices(w)
    cwsw = jnp.asarray(np.concatenate([cw, sw], axis=1))     # (w, 2w)
    chsh = jnp.asarray(np.concatenate([ch, sh], axis=1))     # (h, 2h)
    w2 = _gaussian_weight(h, w)
    w2t = jnp.asarray(np.ascontiguousarray(w2.T))            # (w, h)

    img_spec = pl.BlockSpec((tb * h, w), lambda i: (i, 0))
    cwsw_spec = pl.BlockSpec((w, 2 * w), lambda i: (0, 0))
    chsh_spec = pl.BlockSpec((h, 2 * h), lambda i: (0, 0))
    w2t_spec = pl.BlockSpec((w, h), lambda i: (0, 0))
    out_spec = pl.BlockSpec((1, 8, 128), lambda i: (i, 0, 0))

    # Never clamp the limit below the estimated requirement; stay below the
    # per-generation physical-VMEM safe cap.
    vmem_need = const_b + tb * per_img + (2 << 20)
    vmem_limit = int(min(hard_cap, max(vmem_need, 32 << 20)))

    out = pl.pallas_call(
        _ffl_kernel,
        out_shape=jax.ShapeDtypeStruct((nblocks, 8, 128), jnp.float32),
        grid_spec=pltpu.PrefetchScalarGridSpec(
            num_scalar_prefetch=0,
            grid=(nblocks,),
            in_specs=[img_spec, img_spec, img_spec,
                      cwsw_spec, chsh_spec, w2t_spec],
            out_specs=out_spec),
        compiler_params=pltpu.CompilerParams(
            dimension_semantics=("parallel",),
            vmem_limit_bytes=vmem_limit),
    )(p2, a2, b2, cwsw, chsh, w2t)

    denom = jnp.float32(b * h * w)
    loss_low = jnp.sum(out[:, 0, 0]) / denom
    loss_high = jnp.sum(out[:, 1, 0]) / denom
    return loss_low, loss_high


def _reference(target1, target2, pred):
    # Pure-JAX reference of the (de-aliased) PyTorch forward semantics.
    def freq(x):
        f = jnp.fft.fft2(x.astype(jnp.float32), norm="ortho")
        return jnp.real(f), jnp.imag(f)

    w2 = jnp.asarray(_gaussian_weight(pred.shape[2], pred.shape[3]))
    pr, pi = freq(pred)
    ar, ai = freq(target1)
    br, bi = freq(target2)
    d1 = w2 * (pr - ar) ** 2 + (pi - ai) ** 2
    d2 = w2 * (pr - br) ** 2 + (pi - bi) ** 2
    return jnp.mean(d1), jnp.mean(jnp.maximum(d1, d2))


if __name__ == "__main__":
    key = jax.random.PRNGKey(0)
    k1, k2, k3 = jax.random.split(key, 3)
    shape = (2, 1, 16, 16)  # N, C(=1 required by the module's gaussian view), H, W
    target1 = jax.random.normal(k1, shape, dtype=jnp.float32)
    target2 = jax.random.normal(k2, shape, dtype=jnp.float32)
    pred = jax.random.normal(k3, shape, dtype=jnp.float32)

    loss_low, loss_high = focal_frequency_loss(target1, target2, pred)
    loss_low = jax.block_until_ready(loss_low)
    loss_high = jax.block_until_ready(loss_high)

    ref_low, ref_high = _reference(target1, target2, pred)
    np.testing.assert_allclose(np.asarray(loss_low), np.asarray(ref_low),
                               rtol=1e-3, atol=1e-4)
    np.testing.assert_allclose(np.asarray(loss_high), np.asarray(ref_high),
                               rtol=1e-3, atol=1e-4)

    print("KERNEL_OK")
</pallas_src>

<mosaic_0001>
module attributes {stable_mosaic.version = 11 : i64} {
  func.func @_ffl_kernel(%arg0: i32, %arg1: memref<16x16xf32, #tpu.memory_space<vmem>>, %arg2: memref<16x16xf32, #tpu.memory_space<vmem>>, %arg3: memref<16x16xf32, #tpu.memory_space<vmem>>, %arg4: memref<16x32xf32, #tpu.memory_space<vmem>>, %arg5: memref<16x32xf32, #tpu.memory_space<vmem>>, %arg6: memref<16x16xf32, #tpu.memory_space<vmem>>, %arg7: memref<1x8x128xf32, #tpu.memory_space<vmem>>) attributes {dimension_semantics = [#tpu.dimension_semantics<parallel>], iteration_bounds = array<i64: 2>, scalar_prefetch = 0 : i64, scratch_operands = 0 : i64, tpu.core_type = #tpu.core_type<tc>, window_params = [{transform_indices = @transform_0, window_bounds = array<i64: 16, 16>}, {transform_indices = @transform_1, window_bounds = array<i64: 16, 16>}, {transform_indices = @transform_2, window_bounds = array<i64: 16, 16>}, {pipeline_mode = #tpu.pipeline_mode<synchronous>, transform_indices = @transform_3, window_bounds = array<i64: 16, 32>}, {pipeline_mode = #tpu.pipeline_mode<synchronous>, transform_indices = @transform_4, window_bounds = array<i64: 16, 32>}, {pipeline_mode = #tpu.pipeline_mode<synchronous>, transform_indices = @transform_5, window_bounds = array<i64: 16, 16>}, {transform_indices = @transform_6, window_bounds = array<i64: 1, 8, 128>}]} {
    %c0 = arith.constant 0 : index
    %c0_0 = arith.constant 0 : index
    %0 = vector.load %arg1[%c0, %c0_0] : memref<16x16xf32, #tpu.memory_space<vmem>>, vector<16x16xf32>
    %c0_1 = arith.constant 0 : index
    %c0_2 = arith.constant 0 : index
    %1 = vector.load %arg2[%c0_1, %c0_2] : memref<16x16xf32, #tpu.memory_space<vmem>>, vector<16x16xf32>
    %2 = arith.subf %0, %1 : vector<16x16xf32>
    %c0_3 = arith.constant 0 : index
    %c0_4 = arith.constant 0 : index
    %3 = vector.load %arg3[%c0_3, %c0_4] : memref<16x16xf32, #tpu.memory_space<vmem>>, vector<16x16xf32>
    %4 = arith.subf %0, %3 : vector<16x16xf32>
    %5 = tpu.concatenate %2, %4 in 0 : vector<16x16xf32>, vector<16x16xf32> -> vector<32x16xf32>
    %c0_5 = arith.constant 0 : index
    %c0_6 = arith.constant 0 : index
    %6 = vector.load %arg4[%c0_5, %c0_6] : memref<16x32xf32, #tpu.memory_space<vmem>>, vector<16x32xf32>
    %cst = arith.constant dense<0.000000e+00> : vector<32x32xf32>
    %7 = tpu.matmul %5, %6, %cst {dimension_numbers = #tpu.dot_dimension_numbers<[1], [0], [0], [1], [0, 0, 1, 1], [], []>} : vector<32x16xf32>, vector<16x32xf32>, vector<32x32xf32> -> vector<32x32xf32>
    %8 = vector.shape_cast %7 : vector<32x32xf32> to vector<2x16x32xf32>
    %9 = tpu.transpose %8, [0, 2, 1] : vector<2x16x32xf32> -> vector<2x32x16xf32>
    %10 = vector.shape_cast %9 : vector<2x32x16xf32> to vector<64x16xf32>
    %c0_7 = arith.constant 0 : index
    %c0_8 = arith.constant 0 : index
    %11 = vector.load %arg5[%c0_7, %c0_8] : memref<16x32xf32, #tpu.memory_space<vmem>>, vector<16x32xf32>
    %cst_9 = arith.constant dense<0.000000e+00> : vector<64x32xf32>
    %12 = tpu.matmul %10, %11, %cst_9 {dimension_numbers = #tpu.dot_dimension_numbers<[1], [0], [0], [1], [0, 0, 1, 1], [], []>} : vector<64x16xf32>, vector<16x32xf32>, vector<64x32xf32> -> vector<64x32xf32>
    %13 = vector.shape_cast %12 : vector<64x32xf32> to vector<2x32x32xf32>
    %14 = vector.extract_strided_slice %13 {offsets = [0, 0, 0], sizes = [2, 16, 16], strides = [1, 1, 1]} : vector<2x32x32xf32> to vector<2x16x16xf32>
    %15 = vector.extract_strided_slice %13 {offsets = [0, 0, 16], sizes = [2, 16, 16], strides = [1, 1, 1]} : vector<2x32x32xf32> to vector<2x16x16xf32>
    %16 = vector.extract_strided_slice %13 {offsets = [0, 16, 0], sizes = [2, 16, 16], strides = [1, 1, 1]} : vector<2x32x32xf32> to vector<2x16x16xf32>
    %17 = vector.extract_strided_slice %13 {offsets = [0, 16, 16], sizes = [2, 16, 16], strides = [1, 1, 1]} : vector<2x32x32xf32> to vector<2x16x16xf32>
    %18 = arith.subf %14, %17 : vector<2x16x16xf32>
    %19 = arith.addf %15, %16 : vector<2x16x16xf32>
    %c0_10 = arith.constant 0 : index
    %c0_11 = arith.constant 0 : index
    %20 = vector.load %arg6[%c0_10, %c0_11] : memref<16x16xf32, #tpu.memory_space<vmem>>, vector<16x16xf32>
    %21 = vector.shape_cast %20 : vector<16x16xf32> to vector<1x16x16xf32>
    %22 = arith.mulf %18, %18 : vector<2x16x16xf32>
    %23 = vector.broadcast %21 : vector<1x16x16xf32> to vector<2x16x16xf32>
    %24 = arith.mulf %23, %22 : vector<2x16x16xf32>
    %25 = arith.mulf %19, %19 : vector<2x16x16xf32>
    %26 = arith.addf %24, %25 : vector<2x16x16xf32>
    %27 = vector.extract_strided_slice %26 {offsets = [0, 0, 0], sizes = [1, 16, 16], strides = [1, 1, 1]} : vector<2x16x16xf32> to vector<1x16x16xf32>
    %28 = vector.extract_strided_slice %26 {offsets = [1, 0, 0], sizes = [1, 16, 16], strides = [1, 1, 1]} : vector<2x16x16xf32> to vector<1x16x16xf32>
    %29 = vector.shape_cast %27 : vector<1x16x16xf32> to vector<1x1x16x16xf32>
    %cst_12 = arith.constant dense<0.000000e+00> : vector<1xf32>
    %30 = vector.multi_reduction <add>, %29, %cst_12 [1, 2, 3] : vector<1x1x16x16xf32> to vector<1xf32>
    %31 = vector.shape_cast %30 : vector<1xf32> to vector<1x1x1x1xf32>
    %32 = vector.extract %31[0, 0, 0, 0] : f32 from vector<1x1x1x1xf32>
    %33 = arith.maximumf %27, %28 : vector<1x16x16xf32>
    %34 = vector.shape_cast %33 : vector<1x16x16xf32> to vector<1x1x16x16xf32>
    %cst_13 = arith.constant dense<0.000000e+00> : vector<1xf32>
    %35 = vector.multi_reduction <add>, %34, %cst_13 [1, 2, 3] : vector<1x1x16x16xf32> to vector<1xf32>
    %36 = vector.shape_cast %35 : vector<1xf32> to vector<1x1x1x1xf32>
    %37 = vector.extract %36[0, 0, 0, 0] : f32 from vector<1x1x1x1xf32>
    %38 = tpu.iota {dimensions = array<i32: 0>} : vector<8x128xi32>
    %c0_i32 = arith.constant 0 : i32
    %39 = vector.broadcast %c0_i32 : i32 to vector<8x128xi32>
    %40 = arith.cmpi eq, %38, %39 : vector<8x128xi32>
    %c1_i32 = arith.constant 1 : i32
    %41 = vector.broadcast %c1_i32 : i32 to vector<8x128xi32>
    %42 = arith.cmpi eq, %38, %41 : vector<8x128xi32>
    %cst_14 = arith.constant 0.000000e+00 : f32
    %43 = vector.broadcast %37 : f32 to vector<8x128xf32>
    %44 = vector.broadcast %cst_14 : f32 to vector<8x128xf32>
    %45 = arith.select %42, %43, %44 : vector<8x128xi1>, vector<8x128xf32>
    %46 = vector.broadcast %32 : f32 to vector<8x128xf32>
    %47 = arith.select %40, %46, %45 : vector<8x128xi1>, vector<8x128xf32>
    %48 = vector.shape_cast %47 : vector<8x128xf32> to vector<1x8x128xf32>
    %c0_15 = arith.constant 0 : index
    %c0_16 = arith.constant 0 : index
    %c0_17 = arith.constant 0 : index
    %49 = vector.load %arg7[%c0_15, %c0_16, %c0_17] : memref<1x8x128xf32, #tpu.memory_space<vmem>>, vector<1x8x128xf32>
    tpu.vector_store %arg7[%c0_15, %c0_16, %c0_17], %48 {strides = array<i32>} : memref<1x8x128xf32, #tpu.memory_space<vmem>>, vector<1x8x128xf32>,
    return
  }
  func.func @transform_0(%arg0: i32) -> (i32, i32) {
    %c0_i32 = arith.constant 0 : i32
    %c0_i32_0 = arith.constant 0 : i32
    return %arg0, %c0_i32 : i32, i32
  }
  func.func @transform_1(%arg0: i32) -> (i32, i32) {
    %c0_i32 = arith.constant 0 : i32
    %c0_i32_0 = arith.constant 0 : i32
    return %arg0, %c0_i32 : i32, i32
  }
  func.func @transform_2(%arg0: i32) -> (i32, i32) {
    %c0_i32 = arith.constant 0 : i32
    %c0_i32_0 = arith.constant 0 : i32
    return %arg0, %c0_i32 : i32, i32
  }
  func.func @transform_3(%arg0: i32) -> (i32, i32) {
    %c0_i32 = arith.constant 0 : i32
    %c0_i32_0 = arith.constant 0 : i32
    %c0_i32_1 = arith.constant 0 : i32
    return %c0_i32, %c0_i32_0 : i32, i32
  }
  func.func @transform_4(%arg0: i32) -> (i32, i32) {
    %c0_i32 = arith.constant 0 : i32
    %c0_i32_0 = arith.constant 0 : i32
    %c0_i32_1 = arith.constant 0 : i32
    return %c0_i32, %c0_i32_0 : i32, i32
  }
  func.func @transform_5(%arg0: i32) -> (i32, i32) {
    %c0_i32 = arith.constant 0 : i32
    %c0_i32_0 = arith.constant 0 : i32
    %c0_i32_1 = arith.constant 0 : i32
    return %c0_i32, %c0_i32_0 : i32, i32
  }
  func.func @transform_6(%arg0: i32) -> (i32, i32, i32) {
    %c0_i32 = arith.constant 0 : i32
    %c0_i32_0 = arith.constant 0 : i32
    %c0_i32_1 = arith.constant 0 : i32
    return %arg0, %c0_i32, %c0_i32_0 : i32, i32, i32
  }
}

</mosaic_0001>

<llo_original>
// kernel: tpu_custom_call.1
$region0: #{tpu_custom_call.1}
  #allocation0 [shape = 'u32[]', space=smem, size = 0x4, offset = 0x4, fixed_abs, tag = 'smem constant byte address 0x4 - core index']
  #allocation1 [shape = 'u32[144,128]{1,0:T(1,128)}', space=vmem, size = 0x12000, scoped, tag = 'internal scratch']
  %s0 = inlined_call_operand.vmem [shape: f32[32,16], index: 0, kind: input, shape index: {}]
  %s1 = inlined_call_operand.vmem [shape: f32[32,16], index: 1, kind: input, shape index: {}]
  %s2 = inlined_call_operand.vmem [shape: f32[32,16], index: 2, kind: input, shape index: {}]
  %s3 = inlined_call_operand.vmem [shape: f32[16,32], index: 3, kind: input, shape index: {}]
  %s4 = inlined_call_operand.vmem [shape: f32[16,32], index: 4, kind: input, shape index: {}]
  %s5 = inlined_call_operand.vmem [shape: f32[16,16], index: 5, kind: input, shape index: {}]
  %s6 = inlined_call_operand.hbm [shape: f32[2,8,128], index: 6, kind: output, shape index: {}]
  %s7 = sld [smem:[#allocation0]]
  $region57: #{tpu_custom_call.1} parent=0
    _
  %s9 = ssub.s32 1, %s7
  %s10 = scalar_select 0, %s9, %s7
  $region1: #{tpu_custom_call.1} parent=0
    #allocation2 [shape = 'u8[8192]{0}', space=vmem, size = 0x2000, scoped, tag = 'output window, operand 0']
    #allocation3 [shape = 's32[2]{0}', space=sflag, size = 0x8, scoped, tag = 'scoped memory for tpu_custom_call.1']
    %11 = vsyncpa [#allocation3], 0
    %s12 = scalar_lea.sflag [#allocation3], 1
    %13 = vsyncpa %s12, 0
    loop: start=0, step=1, limit=4
    $region2: #{tpu_custom_call.1} parent=1 // loop_pre_header
      _
    $region3: #{tpu_custom_call.1} parent=1 // loop_header
      %s15 = sphi 0, %s19
      %p16 = scmp.ge.s32.totalorder %s15, 4
      %s25 = sphi 0, %s27
      %s28 = sphi 0, %s25
      %s29 = sphi 0, %s28
      %s45 = sphi 0, %s29
      %s51 = sphi 0, %s53
      %s54 = sphi 0, %s51
      %s55 = sphi 0, %s54
      %s71 = sphi 0, %s55
      %s77 = sphi 0, %s79
      %s80 = sphi 0, %s77
      %s81 = sphi 0, %s80
      %s97 = sphi 0, %s81
      %s101 = sphi 0, %s101
      %s103 = sphi 0, %s101
      %s104 = sphi 0, %s103
      %s118 = sphi 0, %s104
      %s122 = sphi 0, %s122
      %s124 = sphi 0, %s122
      %s125 = sphi 0, %s124
      %s139 = sphi 0, %s125
      %s143 = sphi 0, %s143
      %s145 = sphi 0, %s143
      %s146 = sphi 0, %s145
      %s160 = sphi 0, %s146
      %s166 = sphi 0, %s168
      %s169 = sphi 0, %s166
      %s170 = sphi 0, %s169
      %s186 = sphi 0, %s170
    $region4: #{tpu_custom_call.1} parent=1 // loop_header_branch
      %18 = sbr.rel (%p16) target = $region8
    $region5: #{tpu_custom_call.1} parent=1 // loop_body
      %s20 = ssub.s32 %s15, 1
      %s21 = ssub.s32 %s15, 2
      %s22 = sadd.s32 %s15, 1
      %s23 = ssub.s32 %s15, %s22
      %p24 = scmp.eq.s32.totalorder %s23, 0
      %s26 = sadd.s32 %s25, 1
      %s27 = scalar_select %p24, %s25, %s26
      %p30 = pneg %p24
      %p31 = scmp.eq.s32.totalorder %s15, 1
      %p32 = por %p30, %p31
      %p33 = scmp.ne.s32.totalorder %s25, %s28
      %p34 = scmp.eq.s32.totalorder %s15, 0
      %p35 = por %p33, %p34
      %p36 = scmp.ne.s32.totalorder %s25, %s28
      %p37 = scmp.eq.s32.totalorder %s20, 1
      %p38 = por %p36, %p37
      %p39 = scmp.ne.s32.totalorder %s28, %s29
      %p40 = scmp.eq.s32.totalorder %s20, 0
      %p41 = por %p39, %p40
      %p42 = scmp.ne.s32.totalorder %s28, %s29
      %p43 = scmp.eq.s32.totalorder %s21, 1
      %p44 = por %p42, %p43
      %p46 = scmp.ne.s32.totalorder %s29, %s45
      %p47 = scmp.eq.s32.totalorder %s21, 0
      %p48 = por %p46, %p47
      %s49 = ssub.s32 %s15, %s22
      %p50 = scmp.eq.s32.totalorder %s49, 0
      %s52 = sadd.s32 %s51, 1
      %s53 = scalar_select %p50, %s51, %s52
      %p56 = pneg %p50
      %p57 = scmp.eq.s32.totalorder %s15, 1
      %p58 = por %p56, %p57
      %p59 = scmp.ne.s32.totalorder %s51, %s54
      %p60 = scmp.eq.s32.totalorder %s15, 0
      %p61 = por %p59, %p60
      %p62 = scmp.ne.s32.totalorder %s51, %s54
      %p63 = scmp.eq.s32.totalorder %s20, 1
      %p64 = por %p62, %p63
      %p65 = scmp.ne.s32.totalorder %s54, %s55
      %p66 = scmp.eq.s32.totalorder %s20, 0
      %p67 = por %p65, %p66
      %p68 = scmp.ne.s32.totalorder %s54, %s55
      %p69 = scmp.eq.s32.totalorder %s21, 1
      %p70 = por %p68, %p69
      %p72 = scmp.ne.s32.totalorder %s55, %s71
      %p73 = scmp.eq.s32.totalorder %s21, 0
      %p74 = por %p72, %p73
      %s75 = ssub.s32 %s15, %s22
      %p76 = scmp.eq.s32.totalorder %s75, 0
      %s78 = sadd.s32 %s77, 1
      %s79 = scalar_select %p76, %s77, %s78
      %p82 = pneg %p76
      %p83 = scmp.eq.s32.totalorder %s15, 1
      %p84 = por %p82, %p83
      %p85 = scmp.ne.s32.totalorder %s77, %s80
      %p86 = scmp.eq.s32.totalorder %s15, 0
      %p87 = por %p85, %p86
      %p88 = scmp.ne.s32.totalorder %s77, %s80
      %p89 = scmp.eq.s32.totalorder %s20, 1
      %p90 = por %p88, %p89
      %p91 = scmp.ne.s32.totalorder %s80, %s81
      %p92 = scmp.eq.s32.totalorder %s20, 0
      %p93 = por %p91, %p92
      %p94 = scmp.ne.s32.totalorder %s80, %s81
      %p95 = scmp.eq.s32.totalorder %s21, 1
      %p96 = por %p94, %p95
      %p98 = scmp.ne.s32.totalorder %s81, %s97
      %p99 = scmp.eq.s32.totalorder %s21, 0
      %p100 = por %p98, %p99
      %s102 = sadd.s32 %s101, 1
      %p105 = scmp.eq.s32.totalorder %s15, 1
      %p106 = scmp.ne.s32.totalorder %s101, %s103
      %p107 = scmp.eq.s32.totalorder %s15, 0
      %p108 = por %p106, %p107
      %p109 = scmp.ne.s32.totalorder %s101, %s103
      %p110 = scmp.eq.s32.totalorder %s20, 1
      %p111 = por %p109, %p110
      %p112 = scmp.ne.s32.totalorder %s103, %s104
      %p113 = scmp.eq.s32.totalorder %s20, 0
      %p114 = por %p112, %p113
      %p115 = scmp.ne.s32.totalorder %s103, %s104
      %p116 = scmp.eq.s32.totalorder %s21, 1
      %p117 = por %p115, %p116
      %p119 = scmp.ne.s32.totalorder %s104, %s118
      %p120 = scmp.eq.s32.totalorder %s21, 0
      %p121 = por %p119, %p120
      %s123 = sadd.s32 %s122, 1
      %p126 = scmp.eq.s32.totalorder %s15, 1
      %p127 = scmp.ne.s32.totalorder %s122, %s124
      %p128 = scmp.eq.s32.totalorder %s15, 0
      %p129 = por %p127, %p128
      %p130 = scmp.ne.s32.totalorder %s122, %s124
      %p131 = scmp.eq.s32.totalorder %s20, 1
      %p132 = por %p130, %p131
      %p133 = scmp.ne.s32.totalorder %s124, %s125
      %p134 = scmp.eq.s32.totalorder %s20, 0
      %p135 = por %p133, %p134
      %p136 = scmp.ne.s32.totalorder %s124, %s125
      %p137 = scmp.eq.s32.totalorder %s21, 1
      %p138 = por %p136, %p137
      %p140 = scmp.ne.s32.totalorder %s125, %s139
      %p141 = scmp.eq.s32.totalorder %s21, 0
      %p142 = por %p140, %p141
      %s144 = sadd.s32 %s143, 1
      %p147 = scmp.eq.s32.totalorder %s15, 1
      %p148 = scmp.ne.s32.totalorder %s143, %s145
      %p149 = scmp.eq.s32.totalorder %s15, 0
      %p150 = por %p148, %p149
      %p151 = scmp.ne.s32.totalorder %s143, %s145
      %p152 = scmp.eq.s32.totalorder %s20, 1
      %p153 = por %p151, %p152
      %p154 = scmp.ne.s32.totalorder %s145, %s146
      %p155 = scmp.eq.s32.totalorder %s20, 0
      %p156 = por %p154, %p155
      %p157 = scmp.ne.s32.totalorder %s145, %s146
      %p158 = scmp.eq.s32.totalorder %s21, 1
      %p159 = por %p157, %p158
      %p161 = scmp.ne.s32.totalorder %s146, %s160
      %p162 = scmp.eq.s32.totalorder %s21, 0
      %p163 = por %p161, %p162
      %s164 = ssub.s32 %s15, %s22
      %p165 = scmp.eq.s32.totalorder %s164, 0
      %s167 = sadd.s32 %s166, 1
      %s168 = scalar_select %p165, %s166, %s167
      %p171 = pneg %p165
      %p172 = scmp.eq.s32.totalorder %s15, 1
      %p173 = por %p171, %p172
      %p174 = scmp.ne.s32.totalorder %s166, %s169
      %p175 = scmp.eq.s32.totalorder %s15, 0
      %p176 = por %p174, %p175
      %p177 = scmp.ne.s32.totalorder %s166, %s169
      %p178 = scmp.eq.s32.totalorder %s20, 1
      %p179 = por %p177, %p178
      %p180 = scmp.ne.s32.totalorder %s169, %s170
      %p181 = scmp.eq.s32.totalorder %s20, 0
      %p182 = por %p180, %p181
      %p183 = scmp.ne.s32.totalorder %s169, %s170
      %p184 = scmp.eq.s32.totalorder %s21, 1
      %p185 = por %p183, %p184
      %p187 = scmp.ne.s32.totalorder %s170, %s186
      %p188 = scmp.eq.s32.totalorder %s21, 0
      %p189 = por %p187, %p188
      %p190 = scmp.le.s32.totalorder 1, %s15
      %p191 = scmp.lt.s32.totalorder %s15, 3
      %p192 = pnand %p190, %p191
      %p193 = pneg %p192
      // Predicated region
      $region9: #{tpu_custom_call.1} parent=5 // pred_check
        _
      $region10: #{tpu_custom_call.1} parent=5 // pred_check_branch
        %195 = sbr.rel (%p192) target = $region12
      $region11: #{tpu_custom_call.1} parent=5 // pred_region
        %s196 = ssub.s32 %s15, 1
        // Predicated region
        $region13: #{tpu_custom_call.1} parent=11 // pred_check
          %p197 = pneg %p114
        $region14: #{tpu_custom_call.1} parent=11 // pred_check_branch
          %199 = sbr.rel (%p197) target = $region16
        $region15: #{tpu_custom_call.1} parent=11 // pred_region
          _
        $region16: #{tpu_custom_call.1} parent=11 // pred_fallthru
          _
        // Predicated region
        $region17: #{tpu_custom_call.1} parent=11 // pred_check
          %p200 = pneg %p135
        $region18: #{tpu_custom_call.1} parent=11 // pred_check_branch
          %202 = sbr.rel (%p200) target = $region20
        $region19: #{tpu_custom_call.1} parent=11 // pred_region
          _
        $region20: #{tpu_custom_call.1} parent=11 // pred_fallthru
          _
        // Predicated region
        $region21: #{tpu_custom_call.1} parent=11 // pred_check
          %p203 = pneg %p156
        $region22: #{tpu_custom_call.1} parent=11 // pred_check_branch
          %205 = sbr.rel (%p203) target = $region24
        $region23: #{tpu_custom_call.1} parent=11 // pred_region
          _
        $region24: #{tpu_custom_call.1} parent=11 // pred_fallthru
          _
      $region12: #{tpu_custom_call.1} parent=5 // pred_fallthru
        _
      %p206 = scmp.lt.s32.totalorder %s15, 2
      // Predicated region
      $region25: #{tpu_custom_call.1} parent=5 // pred_check
        %p207 = pneg %p206
      $region26: #{tpu_custom_call.1} parent=5 // pred_check_branch
        %209 = sbr.rel (%p207) target = $region28
      $region27: #{tpu_custom_call.1} parent=5 // pred_region
        // Predicated region
        $region29: #{tpu_custom_call.1} parent=27 // pred_check
          %p210 = pneg %p35
        $region30: #{tpu_custom_call.1} parent=27 // pred_check_branch
          %212 = sbr.rel (%p210) target = $region32
        $region31: #{tpu_custom_call.1} parent=27 // pred_region
          %s213 = smul.u32 2, %s15
          %p214 = scmp.lt.s32.totalorder %s213, 3
          %s215 = scalar_select %p214, %s213, 3
          %s216 = smul.addr %s215, 8
          %s217 = scalar_lea.vmem %s0, %s216
          %s218 = smul.u32 2, %s15
        $region32: #{tpu_custom_call.1} parent=27 // pred_fallthru
          _
        // Predicated region
        $region33: #{tpu_custom_call.1} parent=27 // pred_check
          %p219 = pneg %p61
        $region34: #{tpu_custom_call.1} parent=27 // pred_check_branch
          %221 = sbr.rel (%p219) target = $region36
        $region35: #{tpu_custom_call.1} parent=27 // pred_region
          %s222 = smul.u32 2, %s15
          %p223 = scmp.lt.s32.totalorder %s222, 3
          %s224 = scalar_select %p223, %s222, 3
          %s225 = smul.addr %s224, 8
          %s226 = scalar_lea.vmem %s1, %s225
          %s227 = smul.u32 2, %s15
        $region36: #{tpu_custom_call.1} parent=27 // pred_fallthru
          _
        // Predicated region
        $region37: #{tpu_custom_call.1} parent=27 // pred_check
          %p228 = pneg %p87
        $region38: #{tpu_custom_call.1} parent=27 // pred_check_branch
          %230 = sbr.rel (%p228) target = $region40
        $region39: #{tpu_custom_call.1} parent=27 // pred_region
          %s231 = smul.u32 2, %s15
          %p232 = scmp.lt.s32.totalorder %s231, 3
          %s233 = scalar_select %p232, %s231, 3
          %s234 = smul.addr %s233, 8
          %s235 = scalar_lea.vmem %s2, %s234
          %s236 = smul.u32 2, %s15
        $region40: #{tpu_custom_call.1} parent=27 // pred_fallthru
          _
      $region28: #{tpu_custom_call.1} parent=5 // pred_fallthru
        _
      %p237 = scmp.le.s32.totalorder 1, %s15
      %p238 = scmp.lt.s32.totalorder %s15, 3
      %p239 = pnand %p237, %p238
      %p240 = pneg %p239
      // Predicated region
      $region41: #{tpu_custom_call.1} parent=5 // pred_check
        _
      $region42: #{tpu_custom_call.1} parent=5 // pred_check_branch
        %242 = sbr.rel (%p239) target = $region44
      $region43: #{tpu_custom_call.1} parent=5 // pred_region
        %s243 = ssub.s32 %s15, 1
        %s244 = smul.u32 2, %s20
        %p245 = scmp.lt.s32.totalorder %s244, 3
        %s246 = scalar_select %p245, %s244, 3
        %s247 = smul.addr %s246, 8
        %s248 = scalar_lea.vmem %s0, %s247
        %p249 = pneg %p41
        %p250 = pneg %p38
        %s251 = smul.u32 2, %s20
        %p252 = scmp.lt.s32.totalorder %s251, 3
        %s253 = scalar_select %p252, %s251, 3
        %s254 = smul.addr %s253, 8
        %s255 = scalar_lea.vmem %s1, %s254
        %p256 = pneg %p67
        %p257 = pneg %p64
        %s258 = smul.u32 2, %s20
        %p259 = scmp.lt.s32.totalorder %s258, 3
        %s260 = scalar_select %p259, %s258, 3
        %s261 = smul.addr %s260, 8
        %s262 = scalar_lea.vmem %s2, %s261
        %p263 = pneg %p93
        %p264 = pneg %p90
        %p265 = pneg %p114
        %p266 = pneg %p111
        %p267 = pneg %p135
        %p268 = pneg %p132
        %p269 = pneg %p156
        %p270 = pneg %p153
        %p271 = pneg %p182
        %p272 = pneg %p179
        %s273 = sand.u32 %s169, 1
        %s274 = scalar_lea.sflag [#allocation3], %s273
        %s275 = sand.u32 %s169, 1
        %s276 = smul.addr %s275, 8
        %s277 = scalar_lea.vmem [#allocation2], %s276
        %s278 = smul.u32 2, %s20
        %p279 = scmp.lt.s32.totalorder %s278, 3
        %s280 = scalar_select %p279, %s278, 3
        %s281 = smul.addr %s280, 8
        %s282 = scalar_lea.vmem %s0, %s281
        %s283 = smul.u32 2, %s20
        %s284 = smul.u32 2, %s20
        %p285 = scmp.lt.s32.totalorder %s284, 3
        %s286 = scalar_select %p285, %s284, 3
        %s287 = smul.addr %s286, 8
        %s288 = scalar_lea.vmem %s1, %s287
        %s289 = smul.u32 2, %s20
        %s290 = smul.u32 2, %s20
        %p291 = scmp.lt.s32.totalorder %s290, 3
        %s292 = scalar_select %p291, %s290, 3
        %s293 = smul.addr %s292, 8
        %s294 = scalar_lea.vmem %s2, %s293
        %s295 = smul.u32 2, %s20
        %v296 = vld [vmem:[%s282] sm:$0xff]
        %v297 = vld [vmem:[%s282 + $0x8] sm:$0xff]
        %v298 = vld [vmem:[%s288] sm:$0xff]
        %v299 = vld [vmem:[%s288 + $0x8] sm:$0xff]
        %v300 = vsub.f32 %v296, %v298
        %v301 = vsub.f32 %v297, %v299
        %v302 = vld [vmem:[%s294] sm:$0xff]
        %v303 = vld [vmem:[%s294 + $0x8] sm:$0xff]
        %v304 = vsub.f32 %v296, %v302
        %v305 = vsub.f32 %v297, %v303
        %v306 = vld [vmem:[%s3] sm:$0xff]
        %v307 = vld [vmem:[%s3 + $0x8] sm:$0xff]
        %vm308 = vcmask 130048
        %v310 = vsel %vm308, %v300, 0
        %v313 = vsel %vm308, %v301, 0
        %v316 = vsel %vm308, %v304, 0
        %v319 = vsel %vm308, %v305, 0
        %321 = vmatprep.subr.mxu0 0.0
        %322 = vmatpush1.msra.mxu0 %v306
        %323 = vmatprep.subr.mxu0 0.0
        %324 = vmatpush1.msra.mxu0 %v307
        %325 = vmatprep.subr.mxu0 0.0
        %326 = vmatpush1.msra.mxu0 0.0
        %327 = vmatprep.subr.mxu0 0.0
        %328 = vmatpush1.msra.mxu0 0.0
        %329 = vmatprep.subr.mxu0 0.0
        %330 = vmatpush1.msra.mxu0 0.0
        %331 = vmatprep.subr.mxu0 0.0
        %332 = vmatpush1.msra.mxu0 0.0
        %333 = vmatprep.subr.mxu0 0.0
        %334 = vmatpush1.msra.mxu0 0.0
        %335 = vmatprep.subr.mxu0 0.0
        %336 = vmatpush1.msra.mxu0 0.0
        %337 = vmatprep.subr.mxu0 0.0
        %338 = vmatpush1.msra.mxu0 0.0
        %339 = vmatprep.subr.mxu0 0.0
        %340 = vmatpush1.msra.mxu0 0.0
        %341 = vmatprep.subr.mxu0 0.0
        %342 = vmatpush1.msra.mxu0 0.0
        %343 = vmatprep.subr.mxu0 0.0
        %344 = vmatpush1.msra.mxu0 0.0
        %345 = vmatprep.subr.mxu0 0.0
        %346 = vmatpush1.msra.mxu0 0.0
        %347 = vmatprep.subr.mxu0 0.0
        %348 = vmatpush1.msra.mxu0 0.0
        %349 = vmatprep.subr.mxu0 0.0
        %350 = vmatpush1.msra.mxu0 0.0
        %351 = vmatprep.subr.mxu0 0.0
        %352 = vmatpush1.msra.mxu0 0.0
        %353 = vmatprep.subr.mxu0 0.0
        %354 = vmatpush1.msra.mxu0 0.0
        %355 = vmatprep.subr.mxu0 0.0
        %356 = vmatpush1.msra.mxu0 0.0
        %357 = vmatprep.subr.mxu0 0.0
        %358 = vmatpush1.msra.mxu0 0.0
        %359 = vmatprep.subr.mxu0 0.0
        %360 = vmatpush1.msra.mxu0 0.0
        %361 = vmatprep.subr.mxu0 0.0
        %362 = vmatpush1.msra.mxu0 0.0
        %363 = vmatprep.subr.mxu0 0.0
        %364 = vmatpush1.msra.mxu0 0.0
        %365 = vmatprep.subr.mxu0 0.0
        %366 = vmatpush1.msra.mxu0 0.0
        %367 = vmatprep.subr.mxu0 0.0
        %368 = vmatpush1.msra.mxu0 0.0
        %369 = vmatprep.subr.mxu0 0.0
        %370 = vmatpush1.msra.mxu0 0.0
        %371 = vmatprep.subr.mxu0 0.0
        %372 = vmatpush1.msra.mxu0 0.0
        %373 = vmatprep.subr.mxu0 0.0
        %374 = vmatpush1.msra.mxu0 0.0
        %375 = vmatprep.subr.mxu0 0.0
        %376 = vmatpush1.msra.mxu0 0.0
        %377 = vmatprep.subr.mxu0 0.0
        %378 = vmatpush1.msra.mxu0 0.0
        %379 = vmatprep.subr.mxu0 0.0
        %380 = vmatpush1.msra.mxu0 0.0
        %381 = vmatprep.subr.mxu0 0.0
        %382 = vmatpush1.msra.mxu0 0.0
        %383 = vmatprep.subr.mxu0 0.0
        %384 = vmatpush1.msra.mxu0 0.0
        %385 = vmatprep.mubr.f32.mxu0 0.0
        %386 = vmatmul.mubr.f32.gmra.mrb[0].mxu0 %v310
        %v387 = vpop.f32.mrb[0].mxu0
        %v388 = vadd.f32 0.0, %v387
        %v389 = vpop.f32.mrb[0].mxu0
        %390 = vmatprep.mubr.f32.mxu0 0.0
        %391 = vmatmul.mubr.f32.gmra.mrb[0].mxu0 %v313
        %v392 = vpop.f32.mrb[0].mxu0
        %v393 = vadd.f32 0.0, %v392
        %v394 = vpop.f32.mrb[0].mxu0
        %395 = vmatprep.mubr.f32.mxu0 0.0
        %396 = vmatmul.mubr.f32.gmra.mrb[0].mxu0 %v316
        %v397 = vpop.f32.mrb[0].mxu0
        %v398 = vadd.f32 0.0, %v397
        %v399 = vpop.f32.mrb[0].mxu0
        %400 = vmatprep.mubr.f32.mxu0 0.0
        %401 = vmatmul.mubr.f32.gmra.mrb[0].mxu0 %v319
        %v402 = vpop.f32.mrb[0].mxu0
        %v403 = vadd.f32 0.0, %v402
        %v404 = vpop.f32.mrb[0].mxu0
        %405 = vdwg.mxu0
        %406 = vxpose.xlu0.b32.start [1/16] %v388, 128
        %407 = vxpose.xlu0.b32.cont [2/16] %v393, 128
        %408 = vxpose.xlu0.b32.cont [3/16] 0.0, 128
        %409 = vxpose.xlu0.b32.cont [4/16] 0.0, 128
        %410 = vxpose.xlu0.b32.cont [5/16] 0.0, 128
        %411 = vxpose.xlu0.b32.cont [6/16] 0.0, 128
        %412 = vxpose.xlu0.b32.cont [7/16] 0.0, 128
        %413 = vxpose.xlu0.b32.cont [8/16] 0.0, 128
        %414 = vxpose.xlu0.b32.cont [9/16] 0.0, 128
        %415 = vxpose.xlu0.b32.cont [10/16] 0.0, 128
        %416 = vxpose.xlu0.b32.cont [11/16] 0.0, 128
        %417 = vxpose.xlu0.b32.cont [12/16] 0.0, 128
        %418 = vxpose.xlu0.b32.cont [13/16] 0.0, 128
        %419 = vxpose.xlu0.b32.cont [14/16] 0.0, 128
        %420 = vxpose.xlu0.b32.cont [15/16] 0.0, 128
        %421 = vxpose.xlu0.b32.end [16/16] 0.0, 128
        %v422 = vpop.trf.xlu0
        %v423 = vpop.trf.xlu0
        %v424 = vpop.trf.xlu0
        %v425 = vpop.trf.xlu0
        %v426 = vpop.trf.xlu0
        %v427 = vpop.trf.xlu0
        %v428 = vpop.trf.xlu0
        %v429 = vpop.trf.xlu0
        %v430 = vpop.trf.xlu0
        %v431 = vpop.trf.xlu0
        %v432 = vpop.trf.xlu0
        %v433 = vpop.trf.xlu0
        %v434 = vpop.trf.xlu0
        %v435 = vpop.trf.xlu0
        %v436 = vpop.trf.xlu0
        %v437 = vpop.trf.xlu0
        %438 = vxpose.xlu0.b32.start [1/16] %v398, 128
        %439 = vxpose.xlu0.b32.cont [2/16] %v403, 128
        %440 = vxpose.xlu0.b32.cont [3/16] 0.0, 128
        %441 = vxpose.xlu0.b32.cont [4/16] 0.0, 128
        %442 = vxpose.xlu0.b32.cont [5/16] 0.0, 128
        %443 = vxpose.xlu0.b32.cont [6/16] 0.0, 128
        %444 = vxpose.xlu0.b32.cont [7/16] 0.0, 128
        %445 = vxpose.xlu0.b32.cont [8/16] 0.0, 128
        %446 = vxpose.xlu0.b32.cont [9/16] 0.0, 128
        %447 = vxpose.xlu0.b32.cont [10/16] 0.0, 128
        %448 = vxpose.xlu0.b32.cont [11/16] 0.0, 128
        %449 = vxpose.xlu0.b32.cont [12/16] 0.0, 128
        %450 = vxpose.xlu0.b32.cont [13/16] 0.0, 128
        %451 = vxpose.xlu0.b32.cont [14/16] 0.0, 128
        %452 = vxpose.xlu0.b32.cont [15/16] 0.0, 128
        %453 = vxpose.xlu0.b32.end [16/16] 0.0, 128
        %v454 = vpop.trf.xlu0
        %v455 = vpop.trf.xlu0
        %v456 = vpop.trf.xlu0
        %v457 = vpop.trf.xlu0
        %v458 = vpop.trf.xlu0
        %v459 = vpop.trf.xlu0
        %v460 = vpop.trf.xlu0
        %v461 = vpop.trf.xlu0
        %v462 = vpop.trf.xlu0
        %v463 = vpop.trf.xlu0
        %v464 = vpop.trf.xlu0
        %v465 = vpop.trf.xlu0
        %v466 = vpop.trf.xlu0
        %v467 = vpop.trf.xlu0
        %v468 = vpop.trf.xlu0
        %v469 = vpop.trf.xlu0
        %v470 = vld [vmem:[%s4] sm:$0xff]
        %v471 = vld [vmem:[%s4 + $0x8] sm:$0xff]
        %v473 = vsel %vm308, %v422, 0
        %v476 = vsel %vm308, %v423, 0
        %v479 = vsel %vm308, %v424, 0
        %v482 = vsel %vm308, %v425, 0
        %v485 = vsel %vm308, %v454, 0
        %v488 = vsel %vm308, %v455, 0
        %v491 = vsel %vm308, %v456, 0
        %v494 = vsel %vm308, %v457, 0
        %496 = vmatprep.subr.mxu0 0.0
        %497 = vmatpush1.msra.mxu0 %v470
        %498 = vmatprep.subr.mxu0 0.0
        %499 = vmatpush1.msra.mxu0 %v471
        %500 = vmatprep.subr.mxu0 0.0
        %501 = vmatpush1.msra.mxu0 0.0
        %502 = vmatprep.subr.mxu0 0.0
        %503 = vmatpush1.msra.mxu0 0.0
        %504 = vmatprep.subr.mxu0 0.0
        %505 = vmatpush1.msra.mxu0 0.0
        %506 = vmatprep.subr.mxu0 0.0
        %507 = vmatpush1.msra.mxu0 0.0
        %508 = vmatprep.subr.mxu0 0.0
        %509 = vmatpush1.msra.mxu0 0.0
        %510 = vmatprep.subr.mxu0 0.0
        %511 = vmatpush1.msra.mxu0 0.0
        %512 = vmatprep.subr.mxu0 0.0
        %513 = vmatpush1.msra.mxu0 0.0
        %514 = vmatprep.subr.mxu0 0.0
        %515 = vmatpush1.msra.mxu0 0.0
        %516 = vmatprep.subr.mxu0 0.0
        %517 = vmatpush1.msra.mxu0 0.0
        %518 = vmatprep.subr.mxu0 0.0
        %519 = vmatpush1.msra.mxu0 0.0
        %520 = vmatprep.subr.mxu0 0.0
        %521 = vmatpush1.msra.mxu0 0.0
        %522 = vmatprep.subr.mxu0 0.0
        %523 = vmatpush1.msra.mxu0 0.0
        %524 = vmatprep.subr.mxu0 0.0
        %525 = vmatpush1.msra.mxu0 0.0
        %526 = vmatprep.subr.mxu0 0.0
        %527 = vmatpush1.msra.mxu0 0.0
        %528 = vmatprep.subr.mxu0 0.0
        %529 = vmatpush1.msra.mxu0 0.0
        %530 = vmatprep.subr.mxu0 0.0
        %531 = vmatpush1.msra.mxu0 0.0
        %532 = vmatprep.subr.mxu0 0.0
        %533 = vmatpush1.msra.mxu0 0.0
        %534 = vmatprep.subr.mxu0 0.0
        %535 = vmatpush1.msra.mxu0 0.0
        %536 = vmatprep.subr.mxu0 0.0
        %537 = vmatpush1.msra.mxu0 0.0
        %538 = vmatprep.subr.mxu0 0.0
        %539 = vmatpush1.msra.mxu0 0.0
        %540 = vmatprep.subr.mxu0 0.0
        %541 = vmatpush1.msra.mxu0 0.0
        %542 = vmatprep.subr.mxu0 0.0
        %543 = vmatpush1.msra.mxu0 0.0
        %544 = vmatprep.subr.mxu0 0.0
        %545 = vmatpush1.msra.mxu0 0.0
        %546 = vmatprep.subr.mxu0 0.0
        %547 = vmatpush1.msra.mxu0 0.0
        %548 = vmatprep.subr.mxu0 0.0
        %549 = vmatpush1.msra.mxu0 0.0
        %550 = vmatprep.subr.mxu0 0.0
        %551 = vmatpush1.msra.mxu0 0.0
        %552 = vmatprep.subr.mxu0 0.0
        %553 = vmatpush1.msra.mxu0 0.0
        %554 = vmatprep.subr.mxu0 0.0
        %555 = vmatpush1.msra.mxu0 0.0
        %556 = vmatprep.subr.mxu0 0.0
        %557 = vmatpush1.msra.mxu0 0.0
        %558 = vmatprep.subr.mxu0 0.0
        %559 = vmatpush1.msra.mxu0 0.0
        %560 = vmatprep.mubr.f32.mxu0 0.0
        %561 = vmatmul.mubr.f32.gmra.mrb[0].mxu0 %v473
        %v562 = vpop.f32.mrb[0].mxu0
        %v563 = vadd.f32 0.0, %v562
        %v564 = vpop.f32.mrb[0].mxu0
        %565 = vmatprep.mubr.f32.mxu0 0.0
        %566 = vmatmul.mubr.f32.gmra.mrb[0].mxu0 %v476
        %v567 = vpop.f32.mrb[0].mxu0
        %v568 = vadd.f32 0.0, %v567
        %v569 = vpop.f32.mrb[0].mxu0
        %570 = vmatprep.mubr.f32.mxu0 0.0
        %571 = vmatmul.mubr.f32.gmra.mrb[0].mxu0 %v479
        %v572 = vpop.f32.mrb[0].mxu0
        %v573 = vadd.f32 0.0, %v572
        %v574 = vpop.f32.mrb[0].mxu0
        %575 = vmatprep.mubr.f32.mxu0 0.0
        %576 = vmatmul.mubr.f32.gmra.mrb[0].mxu0 %v482
        %v577 = vpop.f32.mrb[0].mxu0
        %v578 = vadd.f32 0.0, %v577
        %v579 = vpop.f32.mrb[0].mxu0
        %580 = vmatprep.mubr.f32.mxu0 0.0
        %581 = vmatmul.mubr.f32.gmra.mrb[0].mxu0 %v485
        %v582 = vpop.f32.mrb[0].mxu0
        %v583 = vadd.f32 0.0, %v582
        %v584 = vpop.f32.mrb[0].mxu0
        %585 = vmatprep.mubr.f32.mxu0 0.0
        %586 = vmatmul.mubr.f32.gmra.mrb[0].mxu0 %v488
        %v587 = vpop.f32.mrb[0].mxu0
        %v588 = vadd.f32 0.0, %v587
        %v589 = vpop.f32.mrb[0].mxu0
        %590 = vmatprep.mubr.f32.mxu0 0.0
        %591 = vmatmul.mubr.f32.gmra.mrb[0].mxu0 %v491
        %v592 = vpop.f32.mrb[0].mxu0
        %v593 = vadd.f32 0.0, %v592
        %v594 = vpop.f32.mrb[0].mxu0
        %595 = vmatprep.mubr.f32.mxu0 0.0
        %596 = vmatmul.mubr.f32.gmra.mrb[0].mxu0 %v494
        %v597 = vpop.f32.mrb[0].mxu0
        %v598 = vadd.f32 0.0, %v597
        %v599 = vpop.f32.mrb[0].mxu0
        %600 = vdwg.mxu0
        %605 = vrot.lane.b32.xlu0 %v573, 112
        %v606 = vpop.permute.xlu0 %605
        %607 = vrot.lane.b32.xlu0 %v578, 112
        %v608 = vpop.permute.xlu0 %607
        %609 = vrot.lane.b32.xlu0 %v593, 112
        %v610 = vpop.permute.xlu0 %609
        %611 = vrot.lane.b32.xlu0 %v598, 112
        %v612 = vpop.permute.xlu0 %611
        %v617 = vsub.f32 %v563, %v606
        %v618 = vsub.f32 %v568, %v608
        %v619 = vsub.f32 %v583, %v610
        %v620 = vsub.f32 %v588, %v612
        %621 = vrot.lane.b32.xlu0 %v573, 16
        %v622 = vpop.permute.xlu0 %621
        %623 = vrot.lane.b32.xlu0 %v578, 16
        %v624 = vpop.permute.xlu0 %623
        %625 = vrot.lane.b32.xlu0 %v593, 16
        %v626 = vpop.permute.xlu0 %625
        %627 = vrot.lane.b32.xlu0 %v598, 16
        %v628 = vpop.permute.xlu0 %627
        %v633 = vadd.f32 %v563, %v622
        %v634 = vadd.f32 %v568, %v624
        %v635 = vadd.f32 %v583, %v626
        %v636 = vadd.f32 %v588, %v628
        %v637 = vld [vmem:[%s5] sm:$0xff]
        %v638 = vld [vmem:[%s5 + $0x8] sm:$0xff]
        %v639 = vmul.f32 %v617, %v617
        %v640 = vmul.f32 %v618, %v618
        %v641 = vmul.f32 %v619, %v619
        %v642 = vmul.f32 %v620, %v620
        %v643 = vmul.f32 %v637, %v639
        %v644 = vmul.f32 %v638, %v640
        %v645 = vmul.f32 %v637, %v641
        %v646 = vmul.f32 %v638, %v642
        %v647 = vmul.f32 %v633, %v633
        %v648 = vmul.f32 %v634, %v634
        %v649 = vmul.f32 %v635, %v635
        %v650 = vmul.f32 %v636, %v636
        %655 = vrot.lane.b32.xlu0 %v647, 112
        %v656 = vpop.permute.xlu0 %655
        %657 = vrot.lane.b32.xlu0 %v648, 112
        %v658 = vpop.permute.xlu0 %657
        %659 = vrot.lane.b32.xlu0 %v649, 112
        %v660 = vpop.permute.xlu0 %659
        %661 = vrot.lane.b32.xlu0 %v650, 112
        %v662 = vpop.permute.xlu0 %661
        %v667 = vadd.f32 %v643, %v656
        %v668 = vadd.f32 %v644, %v658
        %v669 = vadd.f32 %v645, %v660
        %v670 = vadd.f32 %v646, %v662
        %v671 = vsel %vm308, %v667, 0.0
        %v672 = vsel %vm308, %v668, 0.0
        %v673 = vadd.f32 %v671, %v672
        %674 = vadd.xlane.f32.xlu0 %v673
        %v675 = vpop.xlane.xlu0 %674
        %v676 = vrot.slane %v675, 4
        %v677 = vadd.f32 %v675, %v676
        %v678 = vrot.slane %v677, 2
        %v679 = vadd.f32 %v677, %v678
        %v680 = vrot.slane %v679, 1
        %v681 = vadd.f32 %v679, %v680
        %s682 = vtos %v681
        %v683 = vmax.f32 %v667, %v669
        %v684 = vmax.f32 %v668, %v670
        %v685 = vsel %vm308, %v683, 0.0
        %v686 = vsel %vm308, %v684, 0.0
        %v687 = vadd.f32 %v685, %v686
        %688 = vadd.xlane.f32.xlu0 %v687
        %v689 = vpop.xlane.xlu0 %688
        %v690 = vrot.slane %v689, 4
        %v691 = vadd.f32 %v689, %v690
        %v692 = vrot.slane %v691, 2
        %v693 = vadd.f32 %v691, %v692
        %v694 = vrot.slane %v693, 1
        %v695 = vadd.f32 %v693, %v694
        %s696 = vtos %v695
        %v697 = vlaneseq
        %v698 = vshrl.u32 %v697, 7
        %vm699 = vcmp.eq.s32.totalorder %v698, 0
        %vm700 = vcmp.eq.s32.totalorder %v698, 1
        %v701 = vstv %s696
        %v702 = vsel %vm700, %v701, 0.0
        %v703 = vstv %s682
        %v704 = vsel %vm699, %v703, %v702
        %705 = vst [vmem:[%s277] sm:$0xff] %v704
        %s706 = sand.u32 %s169, 1
        %s707 = scalar_lea.sflag [#allocation3], %s706
        %s708 = sand.u32 %s169, 1
        %s709 = smul.addr %s708, 8
        %s710 = scalar_lea.vmem [#allocation2], %s709
        // Predicated region
        $region45: #{tpu_custom_call.1} parent=43 // pred_check
          %p711 = pneg %p179
        $region46: #{tpu_custom_call.1} parent=43 // pred_check_branch
          %713 = sbr.rel (%p711) target = $region48
        $region47: #{tpu_custom_call.1} parent=43 // pred_region
          %s715 = ssub.s32 128, 128
          %716 = vsyncadd %s707, %s715
          %s717 = smul.addr %s20, 128
          %s718 = scalar_lea.hbm %s6, %s717
          %s720 = sshll.u32 %s710, 4
          %s721 = int_to_ptr.vmem [resolvable:$true] %s720
          %723 = dma.vmem_to_hbm [thread:$0]  %s721, 128, %s718, %s707
        $region48: #{tpu_custom_call.1} parent=43 // pred_fallthru
          _
      $region44: #{tpu_custom_call.1} parent=5 // pred_fallthru
        _
      %p724 = scmp.le.s32.totalorder 2, %s15
      // Predicated region
      $region49: #{tpu_custom_call.1} parent=5 // pred_check
        %p725 = pneg %p724
      $region50: #{tpu_custom_call.1} parent=5 // pred_check_branch
        %727 = sbr.rel (%p725) target = $region52
      $region51: #{tpu_custom_call.1} parent=5 // pred_region
        %s728 = ssub.s32 %s15, 2
        // Predicated region
        $region53: #{tpu_custom_call.1} parent=51 // pred_check
          %p729 = pneg %p185
        $region54: #{tpu_custom_call.1} parent=51 // pred_check_branch
          %731 = sbr.rel (%p729) target = $region56
        $region55: #{tpu_custom_call.1} parent=51 // pred_region
          %s732 = sand.u32 %s170, 1
          %s733 = scalar_lea.sflag [#allocation3], %s732
          %s734 = sand.u32 %s170, 1
          %s735 = smul.addr %s734, 8
          %s736 = scalar_lea.vmem [#allocation2], %s735
          %737 = dma.done %s733, 128
        $region56: #{tpu_custom_call.1} parent=51 // pred_fallthru
          _
      $region52: #{tpu_custom_call.1} parent=5 // pred_fallthru
        _
    $region6: #{tpu_custom_call.1} parent=1 // loop_footer
      %s19 = sadd.s32 1, %s15
    $region7: #{tpu_custom_call.1} parent=1 // loop_footer_branch
      %14 = sbr.rel target = $region3
    $region8: #{tpu_custom_call.1} parent=1 // loop_exit
      _
    %738 = vsyncpa [#allocation3], 1
    %s739 = scalar_lea.sflag [#allocation3], 1
    %740 = vsyncpa %s739, 1

</llo_original>
